<compile_context>
chip_gen: v7x
topology: tpu7x:2x2x1
jax: 0.10.0
libtpu: 0.0.40
codegen_flags: <defaults>
</compile_context>

<pallas_src>
import math

import jax
import jax.numpy as jnp
from jax.experimental import pallas as pl
from jax.experimental.pallas import tpu as pltpu


# ----------------------------------------------------------------------------
# Parameter / buffer construction (plain JAX glue)
# ----------------------------------------------------------------------------
def sinusoidal_pos_embedding(d_model: int, max_len: int, pos_offset: int = 0, f: int = 1):
    position = f * jnp.arange(0, max_len, dtype=jnp.float32)[:, None] + pos_offset
    div_term = jnp.exp(
        jnp.arange(0, d_model, 2, dtype=jnp.float32) * (-math.log(10000.0) / d_model)
    )
    pe = jnp.zeros((max_len, d_model), dtype=jnp.float32)
    pe = pe.at[:, 0::2].set(jnp.sin(position * div_term))
    pe = pe.at[:, 1::2].set(jnp.cos(position * div_term))
    return pe


def relative_distance_encoding(l1: int, l2: int, hidden: int, max_len: int = 300):
    # relative_distance_encoding[0, i, j, :] = pos_end[|j - i|]; only the [:l1, :l2]
    # slice is ever used, so build exactly that (identical values).
    assert l1 <= max_len and l2 <= max_len
    pe = sinusoidal_pos_embedding(hidden, max_len)
    idx = jnp.abs(jnp.arange(l1)[:, None] - jnp.arange(l2)[None, :])
    return pe[idx]  # (l1, l2, hidden) float32


def init_params(key, input_dim1, input_dim2, hidden):
    k1, k2, k3, k4, k5 = jax.random.split(key, 5)
    scale1 = 1.0 / math.sqrt(input_dim1)
    scale2 = 1.0 / math.sqrt(input_dim2)
    scale3 = 1.0 / math.sqrt(hidden)
    # stored already transposed: y = x @ Wt + b
    w1t = jax.random.uniform(k1, (input_dim1, hidden), jnp.float32, -scale1, scale1)
    b1 = jax.random.uniform(k2, (1, hidden), jnp.float32, -scale1, scale1)
    w2t = jax.random.uniform(k3, (input_dim2, hidden), jnp.float32, -scale2, scale2)
    w3t = jax.random.uniform(k4, (hidden, hidden), jnp.float32, -scale3, scale3)
    b3 = jax.random.uniform(k5, (1, hidden), jnp.float32, -scale3, scale3)
    return w1t, b1, w2t, w3t, b3


# ----------------------------------------------------------------------------
# Pallas kernel
# ----------------------------------------------------------------------------
def _rel_concat_mlp_kernel(seq1_ref, seq2_ref, rel_ref,
                           w1t_ref, b1_ref, w2t_ref, w3t_ref, b3_ref,
                           out_ref):
    # seq1_ref: (1, TI, D1) f32   seq2_ref: (1, TJ, D2) f32   rel_ref: (TI, TJ, H) bf16
    # w3t_ref:  (H, H) bf16       out_ref:  (1, TI, TJ, H) out_dtype (bf16 by default)
    ti = seq1_ref.shape[1]
    tj = seq2_ref.shape[1]
    hd = w1t_ref.shape[1]

    s1 = seq1_ref[0]                                        # (TI, D1)
    s2 = seq2_ref[0]                                        # (TJ, D2)

    # W1(seq1) + b1 and W2(seq2) (no bias) -> small MXU matmuls, f32 accumulation.
    a = jnp.dot(s1, w1t_ref[...], preferred_element_type=jnp.float32) + b1_ref[...]   # (TI, H)
    b = jnp.dot(s2, w2t_ref[...], preferred_element_type=jnp.float32)                 # (TJ, H)

    # concat_sum: pairwise broadcast add, activation (ReLU), + relative sinusoidal bias.
    # Kept in f32 so the same kernel is efficient on v5e (no bf16 VALU); on v6e/v7x a
    # packed-bf16 chain would be a further micro-opt.
    pair = jnp.maximum(a[:, None, :] + b[None, :, :], 0.0)                             # (TI, TJ, H)
    pair = pair + rel_ref[...].astype(jnp.float32)

    # W3 + b3 as ONE large-M 2-D MXU matmul (M = TI*TJ) with bf16 operands and f32
    # accumulation: bf16 inputs run at native MXU rate on all three generations.
    # The reshape merges the two MAJOR dims (layout-preserving when TJ % 8 == 0).
    pair_bf16 = pair.reshape(ti * tj, hd).astype(jnp.bfloat16)
    h = jnp.dot(pair_bf16, w3t_ref[...],
                preferred_element_type=jnp.float32) + b3_ref[...]                      # (TI*TJ, H)

    # Final activation fused with the cast to the (bf16) output dtype at the store.
    out_ref[0] = jnp.maximum(h, 0.0).reshape(ti, tj, hd).astype(out_ref.dtype)


# ----------------------------------------------------------------------------
# Tile sizing against a conservative VMEM budget
# ----------------------------------------------------------------------------
def _ceil_to(x: int, m: int) -> int:
    return -(-x // m) * m


def _vmem_capacity_bytes() -> int:
    try:
        cap = int(pltpu.get_tpu_info().vmem_capacity_bytes)
        if cap > 0:
            return cap
    except Exception:
        pass
    return 64 * 1024 * 1024  # conservative fallback (v7x per-TensorCore VMEM)


def _pick_tile(total: int, limit: int, align: int = 8) -> int:
    """Largest t dividing `total` with (t % align == 0 or t == total) and t <= limit.
    Multiples of `align` are preferred so in-kernel reshapes stay layout-preserving;
    the t == total escape is kept only for correctness when total % align != 0."""
    cands = [t for t in range(1, total + 1)
             if total % t == 0 and (t % align == 0 or t == total)]
    fitting = [t for t in cands if t <= limit]
    if not fitting:
        return min(cands)
    aligned = [t for t in fitting if t % align == 0]
    return max(aligned) if aligned else max(fitting)


def _choose_tiles(l1: int, l2: int, h: int, tile_budget_bytes: int, max_rows: int = 2048):
    h_pad = _ceil_to(h, 128)  # lane padding of the H axis in VMEM
    # Conservative per-(i,j)-row VMEM model:
    #   pre-ReLU a+b temp (f32) + pair f32 + pair bf16 + h f32
    #   + 2x double-buffered rel tile (bf16) + 2x double-buffered out tile (<= f32)
    per_row = (4 + 4 + 2 + 4 + 2 * 2 + 2 * 4) * h_pad
    rows = int(max(min(tile_budget_bytes // per_row, max_rows), 64))
    # rel reuse is tile-size independent (batch-innermost grid), so moderate tiles
    # cost nothing in bandwidth; keep >=2 tiles along L1/L2 when they are large so
    # the megacore sharding of the (i, j) axes always has work.
    tj_limit = max(rows // 8, 1)
    if l2 >= 16:
        tj_limit = min(tj_limit, max(l2 // 2, 8))
    tj = _pick_tile(l2, tj_limit, align=16)   # TJ is second-minor of the bf16 rel/out blocks
    ti_limit = max(rows // tj, 1)
    if l1 >= 16:
        ti_limit = min(ti_limit, max(l1 // 2, 8))
    ti = _pick_tile(l1, ti_limit, align=8)
    return ti, tj


# ----------------------------------------------------------------------------
# Wrapper
# ----------------------------------------------------------------------------
def relative_concat_mlp(seq1, seq2, rel_bf16, w1t, b1, w2t, w3t_bf16, b3,
                        mask1=None, mask2=None, *,
                        tile_i=None, tile_j=None, out_dtype=jnp.bfloat16):
    B, L1, D1 = seq1.shape
    _, L2, D2 = seq2.shape
    H = w1t.shape[1]
    assert rel_bf16.shape == (L1, L2, H)
    assert w3t_bf16.dtype == jnp.bfloat16

    # VMEM budgeting: 128 MiB on v5e/v6e, 64 MiB per TensorCore on v7x.  Raise the
    # scoped limit to 75% of physical and budget the streamed tiles to ~40% of that,
    # minus the double-buffered constant weight blocks, leaving headroom for seq
    # tiles, Mosaic internal scratch and spills (keeps v7x safe).
    vmem_cap = _vmem_capacity_bytes()
    vmem_limit = int(vmem_cap * 0.75)
    h_pad = _ceil_to(H, 128)
    weights_bytes = 2 * ((D1 + D2) * h_pad * 4 + h_pad * h_pad * 2 + 2 * h_pad * 4)
    tile_budget = max(int(vmem_limit * 0.40) - weights_bytes, 2 * 1024 * 1024)

    ti_auto, tj_auto = _choose_tiles(L1, L2, H, tile_budget)
    TI = ti_auto if tile_i is None else tile_i
    TJ = tj_auto if tile_j is None else tile_j
    assert L1 % TI == 0 and L2 % TJ == 0

    # Batch axis innermost: rel's block index is constant across it -> its DMA is
    # skipped for (B-1)/B of the steps.  All axes are independent (no accumulator),
    # so everything is "parallel" and v7x's second TensorCore always has work.
    grid = (L1 // TI, L2 // TJ, B)

    # TODO(synk): when H is not a multiple of 128, a lane-dense HBM layout (collapse
    # (L2, H) -> L2*H for rel/out and emit (TI, TJ*H) blocks) would avoid masked
    # partial stores, but it needs a sublane->lane relayout of the matmul result
    # inside the kernel; kept in the natural layout here (the op stays HBM-bound).
    # NOTE: the constant-index weight/bias blocks could use pipeline_mode=pl.Buffered(1)
    # to reclaim their second pipeline buffer; left at the default for robustness
    # (only matters for very large H under v7x's 64 MiB budget).
    out = pl.pallas_call(
        _rel_concat_mlp_kernel,
        out_shape=jax.ShapeDtypeStruct((B, L1, L2, H), out_dtype),
        grid_spec=pltpu.PrefetchScalarGridSpec(
            num_scalar_prefetch=0,
            grid=grid,
            in_specs=[
                pl.BlockSpec((1, TI, D1), lambda ii, jj, bi: (bi, ii, 0)),   # seq1
                pl.BlockSpec((1, TJ, D2), lambda ii, jj, bi: (bi, jj, 0)),   # seq2
                pl.BlockSpec((TI, TJ, H), lambda ii, jj, bi: (ii, jj, 0)),   # rel bias (bf16)
                pl.BlockSpec((D1, H),     lambda ii, jj, bi: (0, 0)),        # W1^T (f32)
                pl.BlockSpec((1, H),      lambda ii, jj, bi: (0, 0)),        # b1
                pl.BlockSpec((D2, H),     lambda ii, jj, bi: (0, 0)),        # W2^T (f32)
                pl.BlockSpec((H, H),      lambda ii, jj, bi: (0, 0)),        # W3^T (bf16)
                pl.BlockSpec((1, H),      lambda ii, jj, bi: (0, 0)),        # b3
            ],
            out_specs=pl.BlockSpec((1, TI, TJ, H),
                                   lambda ii, jj, bi: (bi, ii, jj, 0)),
        ),
        compiler_params=pltpu.CompilerParams(
            dimension_semantics=("parallel", "parallel", "parallel"),
            vmem_limit_bytes=vmem_limit),
    )(seq1, seq2, rel_bf16, w1t, b1, w2t, w3t_bf16, b3)

    mask = None
    if mask1 is not None and mask2 is not None:
        # trivial boolean broadcast — kept as JAX glue (mirrors create_intersection_mask)
        mask = mask1[:, :, None] & mask2[:, None, :]
    return out, mask


# ----------------------------------------------------------------------------
# Pure-JAX reference (mirrors the PyTorch forward) for a correctness check
# ----------------------------------------------------------------------------
def reference(seq1, seq2, rel_bf16, w1t, b1, w2t, w3t_bf16, b3):
    a = seq1 @ w1t + b1[0]
    b = seq2 @ w2t
    pair = jnp.maximum(a[:, :, None, :] + b[:, None, :, :], 0.0)
    pair = pair + rel_bf16.astype(jnp.float32)[None]
    h = jnp.einsum('bijh,hg->bijg', pair, w3t_bf16.astype(jnp.float32)) + b3[0]
    return jnp.maximum(h, 0.0)


if __name__ == "__main__":
    key = jax.random.PRNGKey(0)
    B, L1, L2 = 2, 8, 8
    D1, D2, H = 16, 16, 32

    k_seq1, k_seq2, k_params = jax.random.split(key, 3)
    seq1 = jax.random.normal(k_seq1, (B, L1, D1), jnp.float32)
    seq2 = jax.random.normal(k_seq2, (B, L2, D2), jnp.float32)
    mask1 = jnp.ones((B, L1), dtype=bool)
    mask2 = jnp.ones((B, L2), dtype=bool).at[:, -2:].set(False)

    w1t, b1, w2t, w3t, b3 = init_params(k_params, D1, D2, H)
    w3t_bf16 = w3t.astype(jnp.bfloat16)                          # streamed in bf16 from HBM
    rel = relative_distance_encoding(L1, L2, H, max_len=300)     # f32 builder
    rel_bf16 = rel.astype(jnp.bfloat16)                          # streamed in bf16 from HBM

    out, mask = relative_concat_mlp(seq1, seq2, rel_bf16, w1t, b1, w2t, w3t_bf16, b3,
                                    mask1=mask1, mask2=mask2)
    out = jax.block_until_ready(out)

    ref = reference(seq1, seq2, rel_bf16, w1t, b1, w2t, w3t_bf16, b3)
    assert out.shape == (B, L1, L2, H)
    assert out.dtype == jnp.bfloat16
    assert mask.shape == (B, L1, L2)
    out_f32 = out.astype(jnp.float32)
    max_err = jnp.max(jnp.abs(out_f32 - ref))
    assert jnp.allclose(out_f32, ref, atol=5e-2, rtol=5e-2), f"mismatch vs reference: {max_err}"

    print("KERNEL_OK")
</pallas_src>

<mosaic_0001>
module attributes {stable_mosaic.version = 11 : i64} {
  func.func @_rel_concat_mlp_kernel(%arg0: i32, %arg1: i32, %arg2: i32, %arg3: memref<1x8x16xf32, #tpu.memory_space<vmem>>, %arg4: memref<1x8x16xf32, #tpu.memory_space<vmem>>, %arg5: memref<8x8x32xbf16, #tpu.memory_space<vmem>>, %arg6: memref<16x32xf32, #tpu.memory_space<vmem>>, %arg7: memref<1x32xf32, #tpu.memory_space<vmem>>, %arg8: memref<16x32xf32, #tpu.memory_space<vmem>>, %arg9: memref<32x32xbf16, #tpu.memory_space<vmem>>, %arg10: memref<1x32xf32, #tpu.memory_space<vmem>>, %arg11: memref<1x8x8x32xbf16, #tpu.memory_space<vmem>>) attributes {dimension_semantics = [#tpu.dimension_semantics<parallel>, #tpu.dimension_semantics<parallel>, #tpu.dimension_semantics<parallel>], iteration_bounds = array<i64: 1, 1, 2>, scalar_prefetch = 0 : i64, scratch_operands = 0 : i64, tpu.core_type = #tpu.core_type<tc>, window_params = [{transform_indices = @transform_0, window_bounds = array<i64: 1, 8, 16>}, {transform_indices = @transform_1, window_bounds = array<i64: 1, 8, 16>}, {transform_indices = @transform_2, window_bounds = array<i64: 8, 8, 32>}, {pipeline_mode = #tpu.pipeline_mode<synchronous>, transform_indices = @transform_3, window_bounds = array<i64: 16, 32>}, {pipeline_mode = #tpu.pipeline_mode<synchronous>, transform_indices = @transform_4, window_bounds = array<i64: 1, 32>}, {pipeline_mode = #tpu.pipeline_mode<synchronous>, transform_indices = @transform_5, window_bounds = array<i64: 16, 32>}, {pipeline_mode = #tpu.pipeline_mode<synchronous>, transform_indices = @transform_6, window_bounds = array<i64: 32, 32>}, {pipeline_mode = #tpu.pipeline_mode<synchronous>, transform_indices = @transform_7, window_bounds = array<i64: 1, 32>}, {transform_indices = @transform_8, window_bounds = array<i64: 1, 8, 8, 32>}]} {
    %c0 = arith.constant 0 : index
    %c0_0 = arith.constant 0 : index
    %c0_1 = arith.constant 0 : index
    %0 = vector.load %arg3[%c0, %c0_0, %c0_1] : memref<1x8x16xf32, #tpu.memory_space<vmem>>, vector<1x8x16xf32>
    %1 = vector.shape_cast %0 : vector<1x8x16xf32> to vector<8x16xf32>
    %c0_2 = arith.constant 0 : index
    %c0_3 = arith.constant 0 : index
    %c0_4 = arith.constant 0 : index
    %2 = vector.load %arg4[%c0_2, %c0_3, %c0_4] : memref<1x8x16xf32, #tpu.memory_space<vmem>>, vector<1x8x16xf32>
    %3 = vector.shape_cast %2 : vector<1x8x16xf32> to vector<8x16xf32>
    %c0_5 = arith.constant 0 : index
    %c0_6 = arith.constant 0 : index
    %4 = vector.load %arg6[%c0_5, %c0_6] : memref<16x32xf32, #tpu.memory_space<vmem>>, vector<16x32xf32>
    %cst = arith.constant dense<0.000000e+00> : vector<8x32xf32>
    %5 = tpu.matmul %1, %4, %cst {dimension_numbers = #tpu.dot_dimension_numbers<[1], [0], [0], [1], [0, 0, 1, 1], [], []>} : vector<8x16xf32>, vector<16x32xf32>, vector<8x32xf32> -> vector<8x32xf32>
    %c0_7 = arith.constant 0 : index
    %c0_8 = arith.constant 0 : index
    %6 = vector.load %arg7[%c0_7, %c0_8] : memref<1x32xf32, #tpu.memory_space<vmem>>, vector<1x32xf32>
    %7 = vector.broadcast %6 : vector<1x32xf32> to vector<8x32xf32>
    %8 = arith.addf %5, %7 : vector<8x32xf32>
    %c0_9 = arith.constant 0 : index
    %c0_10 = arith.constant 0 : index
    %9 = vector.load %arg8[%c0_9, %c0_10] : memref<16x32xf32, #tpu.memory_space<vmem>>, vector<16x32xf32>
    %cst_11 = arith.constant dense<0.000000e+00> : vector<8x32xf32>
    %10 = tpu.matmul %3, %9, %cst_11 {dimension_numbers = #tpu.dot_dimension_numbers<[1], [0], [0], [1], [0, 0, 1, 1], [], []>} : vector<8x16xf32>, vector<16x32xf32>, vector<8x32xf32> -> vector<8x32xf32>
    %11 = vector.shape_cast %8 : vector<8x32xf32> to vector<8x1x32xf32>
    %12 = vector.shape_cast %10 : vector<8x32xf32> to vector<1x8x32xf32>
    %13 = vector.broadcast %11 : vector<8x1x32xf32> to vector<8x8x32xf32>
    %14 = vector.broadcast %12 : vector<1x8x32xf32> to vector<8x8x32xf32>
    %15 = arith.addf %13, %14 : vector<8x8x32xf32>
    %cst_12 = arith.constant 0.000000e+00 : f32
    %16 = vector.broadcast %cst_12 : f32 to vector<8x8x32xf32>
    %17 = arith.maximumf %15, %16 : vector<8x8x32xf32>
    %c0_13 = arith.constant 0 : index
    %c0_14 = arith.constant 0 : index
    %c0_15 = arith.constant 0 : index
    %18 = vector.load %arg5[%c0_13, %c0_14, %c0_15] : memref<8x8x32xbf16, #tpu.memory_space<vmem>>, vector<8x8x32xbf16>
    %19 = arith.extf %18 : vector<8x8x32xbf16> to vector<8x8x32xf32>
    %20 = arith.addf %17, %19 : vector<8x8x32xf32>
    %21 = vector.shape_cast %20 : vector<8x8x32xf32> to vector<64x32xf32>
    %22 = arith.truncf %21 : vector<64x32xf32> to vector<64x32xbf16>
    %c0_16 = arith.constant 0 : index
    %c0_17 = arith.constant 0 : index
    %23 = vector.load %arg9[%c0_16, %c0_17] : memref<32x32xbf16, #tpu.memory_space<vmem>>, vector<32x32xbf16>
    %cst_18 = arith.constant dense<0.000000e+00> : vector<64x32xf32>
    %24 = tpu.matmul %22, %23, %cst_18 {dimension_numbers = #tpu.dot_dimension_numbers<[1], [0], [0], [1], [0, 0, 1, 1], [], []>} : vector<64x32xbf16>, vector<32x32xbf16>, vector<64x32xf32> -> vector<64x32xf32>
    %c0_19 = arith.constant 0 : index
    %c0_20 = arith.constant 0 : index
    %25 = vector.load %arg10[%c0_19, %c0_20] : memref<1x32xf32, #tpu.memory_space<vmem>>, vector<1x32xf32>
    %26 = vector.broadcast %25 : vector<1x32xf32> to vector<64x32xf32>
    %27 = arith.addf %24, %26 : vector<64x32xf32>
    %cst_21 = arith.constant 0.000000e+00 : f32
    %28 = vector.broadcast %cst_21 : f32 to vector<64x32xf32>
    %29 = arith.maximumf %27, %28 : vector<64x32xf32>
    %30 = vector.shape_cast %29 : vector<64x32xf32> to vector<8x8x32xf32>
    %31 = arith.truncf %30 : vector<8x8x32xf32> to vector<8x8x32xbf16>
    %c0_22 = arith.constant 0 : index
    %c0_23 = arith.constant 0 : index
    %c0_24 = arith.constant 0 : index
    %c0_25 = arith.constant 0 : index
    %32 = vector.load %arg11[%c0_22, %c0_23, %c0_24, %c0_25] : memref<1x8x8x32xbf16, #tpu.memory_space<vmem>>, vector<1x8x8x32xbf16>
    %33 = vector.shape_cast %32 : vector<1x8x8x32xbf16> to vector<8x8x32xbf16>
    %34 = vector.shape_cast %31 : vector<8x8x32xbf16> to vector<1x8x8x32xbf16>
    tpu.vector_store %arg11[%c0_22, %c0_23, %c0_24, %c0_25], %34 {strides = array<i32>} : memref<1x8x8x32xbf16, #tpu.memory_space<vmem>>, vector<1x8x8x32xbf16>,
    return
  }
  func.func @transform_0(%arg0: i32, %arg1: i32, %arg2: i32) -> (i32, i32, i32) {
    %c0_i32 = arith.constant 0 : i32
    %c0_i32_0 = arith.constant 0 : i32
    return %arg2, %arg0, %c0_i32 : i32, i32, i32
  }
  func.func @transform_1(%arg0: i32, %arg1: i32, %arg2: i32) -> (i32, i32, i32) {
    %c0_i32 = arith.constant 0 : i32
    %c0_i32_0 = arith.constant 0 : i32
    return %arg2, %arg1, %c0_i32 : i32, i32, i32
  }
  func.func @transform_2(%arg0: i32, %arg1: i32, %arg2: i32) -> (i32, i32, i32) {
    %c0_i32 = arith.constant 0 : i32
    %c0_i32_0 = arith.constant 0 : i32
    return %arg0, %arg1, %c0_i32 : i32, i32, i32
  }
  func.func @transform_3(%arg0: i32, %arg1: i32, %arg2: i32) -> (i32, i32) {
    %c0_i32 = arith.constant 0 : i32
    %c0_i32_0 = arith.constant 0 : i32
    %c0_i32_1 = arith.constant 0 : i32
    return %c0_i32, %c0_i32_0 : i32, i32
  }
  func.func @transform_4(%arg0: i32, %arg1: i32, %arg2: i32) -> (i32, i32) {
    %c0_i32 = arith.constant 0 : i32
    %c0_i32_0 = arith.constant 0 : i32
    %c0_i32_1 = arith.constant 0 : i32
    return %c0_i32, %c0_i32_0 : i32, i32
  }
  func.func @transform_5(%arg0: i32, %arg1: i32, %arg2: i32) -> (i32, i32) {
    %c0_i32 = arith.constant 0 : i32
    %c0_i32_0 = arith.constant 0 : i32
    %c0_i32_1 = arith.constant 0 : i32
    return %c0_i32, %c0_i32_0 : i32, i32
  }
  func.func @transform_6(%arg0: i32, %arg1: i32, %arg2: i32) -> (i32, i32) {
    %c0_i32 = arith.constant 0 : i32
    %c0_i32_0 = arith.constant 0 : i32
    %c0_i32_1 = arith.constant 0 : i32
    return %c0_i32, %c0_i32_0 : i32, i32
  }
  func.func @transform_7(%arg0: i32, %arg1: i32, %arg2: i32) -> (i32, i32) {
    %c0_i32 = arith.constant 0 : i32
    %c0_i32_0 = arith.constant 0 : i32
    %c0_i32_1 = arith.constant 0 : i32
    return %c0_i32, %c0_i32_0 : i32, i32
  }
  func.func @transform_8(%arg0: i32, %arg1: i32, %arg2: i32) -> (i32, i32, i32, i32) {
    %c0_i32 = arith.constant 0 : i32
    %c0_i32_0 = arith.constant 0 : i32
    return %arg2, %arg0, %arg1, %c0_i32 : i32, i32, i32, i32
  }
}

</mosaic_0001>

<llo_original>
// kernel: tpu_custom_call.1
$region0: #{tpu_custom_call.1}
  #allocation0 [shape = 'u32[]', space=smem, size = 0x4, offset = 0x4, fixed_abs, tag = 'smem constant byte address 0x4 - core index']
  #allocation1 [shape = 'u32[144,128]{1,0:T(1,128)}', space=vmem, size = 0x12000, scoped, tag = 'internal scratch']
  %s0 = inlined_call_operand.hbm [shape: f32[2,8,16], index: 0, kind: input, shape index: {}]
  %s1 = inlined_call_operand.hbm [shape: f32[2,8,16], index: 1, kind: input, shape index: {}]
  %s2 = inlined_call_operand.hbm [shape: bf16[8,8,32], index: 2, kind: input, shape index: {}]
  %s3 = inlined_call_operand.hbm [shape: f32[16,32], index: 3, kind: input, shape index: {}]
  %s4 = inlined_call_operand.vmem [shape: f32[1,32], index: 4, kind: input, shape index: {}]
  %s5 = inlined_call_operand.vmem [shape: f32[16,32], index: 5, kind: input, shape index: {}]
  %s6 = inlined_call_operand.hbm [shape: bf16[32,32], index: 6, kind: input, shape index: {}]
  %s7 = inlined_call_operand.vmem [shape: f32[1,32], index: 7, kind: input, shape index: {}]
  %s8 = inlined_call_operand.hbm [shape: bf16[2,8,8,32], index: 8, kind: output, shape index: {}]
  %s9 = sld [smem:[#allocation0]]
  $region85: #{tpu_custom_call.1} parent=0
    _
  %s11 = ssub.s32 1, %s9
  %s12 = scalar_select 0, %s11, %s9
  $region1: #{tpu_custom_call.1} parent=0
    #allocation2 [shape = 'u8[8192]{0}', space=vmem, size = 0x2000, scoped, tag = 'input window, operand 0']
    #allocation3 [shape = 's32[2]{0}', space=sflag, size = 0x8, scoped, tag = 'scoped memory for tpu_custom_call.1']
    #allocation4 [shape = 's32[2]{0}', space=sflag, size = 0x8, scoped, tag = 'scoped memory for tpu_custom_call.1']
    #allocation5 [shape = 'u8[8192]{0}', space=vmem, size = 0x2000, scoped, tag = 'input window, operand 1']
    #allocation6 [shape = 's32[2]{0}', space=sflag, size = 0x8, scoped, tag = 'scoped memory for tpu_custom_call.1']
    #allocation7 [shape = 'u8[16384]{0}', space=vmem, size = 0x4000, scoped, tag = 'input window, operand 2, single buffered']
    #allocation8 [shape = 'u8[8192]{0}', space=vmem, size = 0x2000, scoped, tag = 'input window, operand 3, single buffered']
    #allocation9 [shape = 's32[1]{0}', space=sflag, size = 0x4, scoped, tag = 'scoped memory for tpu_custom_call.1']
    #allocation10 [shape = 'u8[8192]{0}', space=vmem, size = 0x2000, scoped, tag = 'input window, operand 6, single buffered']
    #allocation11 [shape = 'u8[32768]{0}', space=vmem, size = 0x8000, scoped, tag = 'output window, operand 0']
    %13 = vsyncpa [#allocation3], 0
    %s14 = scalar_lea.sflag [#allocation3], 1
    %15 = vsyncpa %s14, 0
    %16 = vsyncpa [#allocation6], 0
    %s17 = scalar_lea.sflag [#allocation6], 1
    %18 = vsyncpa %s17, 0
    %19 = vsyncpa [#allocation9], 0
    %20 = vsyncpa [#allocation4], 0
    %s21 = scalar_lea.sflag [#allocation4], 1
    %22 = vsyncpa %s21, 0
    loop: start=0, step=1, limit=4
    $region2: #{tpu_custom_call.1} parent=1 // loop_pre_header
      _
    $region3: #{tpu_custom_call.1} parent=1 // loop_header
      %s24 = sphi 0, %s28
      %p25 = scmp.ge.s32.totalorder %s24, 4
      %s31 = sphi 0, %s50
      %s32 = sphi 0, %s46
      %s33 = sphi 0, %s42
      %s34 = sphi 0, %s31
      %s35 = sphi 0, %s32
      %s36 = sphi 0, %s33
      %s37 = sphi 0, %s34
      %s38 = sphi 0, %s35
      %s39 = sphi 0, %s36
      %s55 = sphi 0, %s57
      %s58 = sphi 0, %s55
      %s59 = sphi 0, %s58
      %s75 = sphi 0, %s59
      %s83 = sphi 0, %s85
      %s86 = sphi 0, %s83
      %s87 = sphi 0, %s86
      %s103 = sphi 0, %s87
      %s111 = sphi 0, %s113
      %s114 = sphi 0, %s111
      %s115 = sphi 0, %s114
      %s131 = sphi 0, %s115
      %s135 = sphi 0, %s135
      %s137 = sphi 0, %s135
      %s138 = sphi 0, %s137
      %s152 = sphi 0, %s138
      %s156 = sphi 0, %s156
      %s158 = sphi 0, %s156
      %s159 = sphi 0, %s158
      %s173 = sphi 0, %s159
      %s177 = sphi 0, %s177
      %s179 = sphi 0, %s177
      %s180 = sphi 0, %s179
      %s194 = sphi 0, %s180
      %s198 = sphi 0, %s198
      %s200 = sphi 0, %s198
      %s201 = sphi 0, %s200
      %s215 = sphi 0, %s201
      %s219 = sphi 0, %s219
      %s221 = sphi 0, %s219
      %s222 = sphi 0, %s221
      %s236 = sphi 0, %s222
      %s246 = sphi 0, %s248
      %s249 = sphi 0, %s246
      %s250 = sphi 0, %s249
      %s266 = sphi 0, %s250
    $region4: #{tpu_custom_call.1} parent=1 // loop_header_branch
      %27 = sbr.rel (%p25) target = $region8
    $region5: #{tpu_custom_call.1} parent=1 // loop_body
      %s29 = ssub.s32 %s24, 1
      %s30 = ssub.s32 %s24, 2
      %s40 = sadd.s32 1, %s33
      %p41 = scmp.ge.s32.totalorder %s40, 2
      %s42 = scalar_select %p41, 0, %s40
      %s43 = sadd.s32 1, %s32
      %s44 = scalar_select %p41, %s43, %s32
      %p45 = scmp.ge.s32.totalorder %s44, 1
      %s46 = scalar_select %p45, 0, %s44
      %s47 = sadd.s32 1, %s31
      %s48 = scalar_select %p45, %s47, %s31
      %p49 = scmp.ge.s32.totalorder %s48, 1
      %s50 = scalar_select %p49, 0, %s48
      %s51 = ssub.s32 %s33, %s42
      %s52 = ssub.s32 %s31, %s50
      %s53 = sor.u32 %s51, %s52
      %p54 = scmp.eq.s32.totalorder %s53, 0
      %s56 = sadd.s32 %s55, 1
      %s57 = scalar_select %p54, %s55, %s56
      %p60 = pneg %p54
      %p61 = scmp.eq.s32.totalorder %s24, 1
      %p62 = por %p60, %p61
      %p63 = scmp.ne.s32.totalorder %s55, %s58
      %p64 = scmp.eq.s32.totalorder %s24, 0
      %p65 = por %p63, %p64
      %p66 = scmp.ne.s32.totalorder %s55, %s58
      %p67 = scmp.eq.s32.totalorder %s29, 1
      %p68 = por %p66, %p67
      %p69 = scmp.ne.s32.totalorder %s58, %s59
      %p70 = scmp.eq.s32.totalorder %s29, 0
      %p71 = por %p69, %p70
      %p72 = scmp.ne.s32.totalorder %s58, %s59
      %p73 = scmp.eq.s32.totalorder %s30, 1
      %p74 = por %p72, %p73
      %p76 = scmp.ne.s32.totalorder %s59, %s75
      %p77 = scmp.eq.s32.totalorder %s30, 0
      %p78 = por %p76, %p77
      %s79 = ssub.s32 %s33, %s42
      %s80 = ssub.s32 %s32, %s46
      %s81 = sor.u32 %s79, %s80
      %p82 = scmp.eq.s32.totalorder %s81, 0
      %s84 = sadd.s32 %s83, 1
      %s85 = scalar_select %p82, %s83, %s84
      %p88 = pneg %p82
      %p89 = scmp.eq.s32.totalorder %s24, 1
      %p90 = por %p88, %p89
      %p91 = scmp.ne.s32.totalorder %s83, %s86
      %p92 = scmp.eq.s32.totalorder %s24, 0
      %p93 = por %p91, %p92
      %p94 = scmp.ne.s32.totalorder %s83, %s86
      %p95 = scmp.eq.s32.totalorder %s29, 1
      %p96 = por %p94, %p95
      %p97 = scmp.ne.s32.totalorder %s86, %s87
      %p98 = scmp.eq.s32.totalorder %s29, 0
      %p99 = por %p97, %p98
      %p100 = scmp.ne.s32.totalorder %s86, %s87
      %p101 = scmp.eq.s32.totalorder %s30, 1
      %p102 = por %p100, %p101
      %p104 = scmp.ne.s32.totalorder %s87, %s103
      %p105 = scmp.eq.s32.totalorder %s30, 0
      %p106 = por %p104, %p105
      %s107 = ssub.s32 %s31, %s50
      %s108 = ssub.s32 %s32, %s46
      %s109 = sor.u32 %s107, %s108
      %p110 = scmp.eq.s32.totalorder %s109, 0
      %s112 = sadd.s32 %s111, 1
      %s113 = scalar_select %p110, %s111, %s112
      %p116 = pneg %p110
      %p117 = scmp.eq.s32.totalorder %s24, 1
      %p118 = por %p116, %p117
      %p119 = scmp.ne.s32.totalorder %s111, %s114
      %p120 = scmp.eq.s32.totalorder %s24, 0
      %p121 = por %p119, %p120
      %p122 = scmp.ne.s32.totalorder %s111, %s114
      %p123 = scmp.eq.s32.totalorder %s29, 1
      %p124 = por %p122, %p123
      %p125 = scmp.ne.s32.totalorder %s114, %s115
      %p126 = scmp.eq.s32.totalorder %s29, 0
      %p127 = por %p125, %p126
      %p128 = scmp.ne.s32.totalorder %s114, %s115
      %p129 = scmp.eq.s32.totalorder %s30, 1
      %p130 = por %p128, %p129
      %p132 = scmp.ne.s32.totalorder %s115, %s131
      %p133 = scmp.eq.s32.totalorder %s30, 0
      %p134 = por %p132, %p133
      %s136 = sadd.s32 %s135, 1
      %p139 = scmp.eq.s32.totalorder %s24, 1
      %p140 = scmp.ne.s32.totalorder %s135, %s137
      %p141 = scmp.eq.s32.totalorder %s24, 0
      %p142 = por %p140, %p141
      %p143 = scmp.ne.s32.totalorder %s135, %s137
      %p144 = scmp.eq.s32.totalorder %s29, 1
      %p145 = por %p143, %p144
      %p146 = scmp.ne.s32.totalorder %s137, %s138
      %p147 = scmp.eq.s32.totalorder %s29, 0
      %p148 = por %p146, %p147
      %p149 = scmp.ne.s32.totalorder %s137, %s138
      %p150 = scmp.eq.s32.totalorder %s30, 1
      %p151 = por %p149, %p150
      %p153 = scmp.ne.s32.totalorder %s138, %s152
      %p154 = scmp.eq.s32.totalorder %s30, 0
      %p155 = por %p153, %p154
      %s157 = sadd.s32 %s156, 1
      %p160 = scmp.eq.s32.totalorder %s24, 1
      %p161 = scmp.ne.s32.totalorder %s156, %s158
      %p162 = scmp.eq.s32.totalorder %s24, 0
      %p163 = por %p161, %p162
      %p164 = scmp.ne.s32.totalorder %s156, %s158
      %p165 = scmp.eq.s32.totalorder %s29, 1
      %p166 = por %p164, %p165
      %p167 = scmp.ne.s32.totalorder %s158, %s159
      %p168 = scmp.eq.s32.totalorder %s29, 0
      %p169 = por %p167, %p168
      %p170 = scmp.ne.s32.totalorder %s158, %s159
      %p171 = scmp.eq.s32.totalorder %s30, 1
      %p172 = por %p170, %p171
      %p174 = scmp.ne.s32.totalorder %s159, %s173
      %p175 = scmp.eq.s32.totalorder %s30, 0
      %p176 = por %p174, %p175
      %s178 = sadd.s32 %s177, 1
      %p181 = scmp.eq.s32.totalorder %s24, 1
      %p182 = scmp.ne.s32.totalorder %s177, %s179
      %p183 = scmp.eq.s32.totalorder %s24, 0
      %p184 = por %p182, %p183
      %p185 = scmp.ne.s32.totalorder %s177, %s179
      %p186 = scmp.eq.s32.totalorder %s29, 1
      %p187 = por %p185, %p186
      %p188 = scmp.ne.s32.totalorder %s179, %s180
      %p189 = scmp.eq.s32.totalorder %s29, 0
      %p190 = por %p188, %p189
      %p191 = scmp.ne.s32.totalorder %s179, %s180
      %p192 = scmp.eq.s32.totalorder %s30, 1
      %p193 = por %p191, %p192
      %p195 = scmp.ne.s32.totalorder %s180, %s194
      %p196 = scmp.eq.s32.totalorder %s30, 0
      %p197 = por %p195, %p196
      %s199 = sadd.s32 %s198, 1
      %p202 = scmp.eq.s32.totalorder %s24, 1
      %p203 = scmp.ne.s32.totalorder %s198, %s200
      %p204 = scmp.eq.s32.totalorder %s24, 0
      %p205 = por %p203, %p204
      %p206 = scmp.ne.s32.totalorder %s198, %s200
      %p207 = scmp.eq.s32.totalorder %s29, 1
      %p208 = por %p206, %p207
      %p209 = scmp.ne.s32.totalorder %s200, %s201
      %p210 = scmp.eq.s32.totalorder %s29, 0
      %p211 = por %p209, %p210
      %p212 = scmp.ne.s32.totalorder %s200, %s201
      %p213 = scmp.eq.s32.totalorder %s30, 1
      %p214 = por %p212, %p213
      %p216 = scmp.ne.s32.totalorder %s201, %s215
      %p217 = scmp.eq.s32.totalorder %s30, 0
      %p218 = por %p216, %p217
      %s220 = sadd.s32 %s219, 1
      %p223 = scmp.eq.s32.totalorder %s24, 1
      %p224 = scmp.ne.s32.totalorder %s219, %s221
      %p225 = scmp.eq.s32.totalorder %s24, 0
      %p226 = por %p224, %p225
      %p227 = scmp.ne.s32.totalorder %s219, %s221
      %p228 = scmp.eq.s32.totalorder %s29, 1
      %p229 = por %p227, %p228
      %p230 = scmp.ne.s32.totalorder %s221, %s222
      %p231 = scmp.eq.s32.totalorder %s29, 0
      %p232 = por %p230, %p231
      %p233 = scmp.ne.s32.totalorder %s221, %s222
      %p234 = scmp.eq.s32.totalorder %s30, 1
      %p235 = por %p233, %p234
      %p237 = scmp.ne.s32.totalorder %s222, %s236
      %p238 = scmp.eq.s32.totalorder %s30, 0
      %p239 = por %p237, %p238
      %s240 = ssub.s32 %s33, %s42
      %s241 = ssub.s32 %s31, %s50
      %s242 = sor.u32 %s240, %s241
      %s243 = ssub.s32 %s32, %s46
      %s244 = sor.u32 %s242, %s243
      %p245 = scmp.eq.s32.totalorder %s244, 0
      %s247 = sadd.s32 %s246, 1
      %s248 = scalar_select %p245, %s246, %s247
      %p251 = pneg %p245
      %p252 = scmp.eq.s32.totalorder %s24, 1
      %p253 = por %p251, %p252
      %p254 = scmp.ne.s32.totalorder %s246, %s249
      %p255 = scmp.eq.s32.totalorder %s24, 0
      %p256 = por %p254, %p255
      %p257 = scmp.ne.s32.totalorder %s246, %s249
      %p258 = scmp.eq.s32.totalorder %s29, 1
      %p259 = por %p257, %p258
      %p260 = scmp.ne.s32.totalorder %s249, %s250
      %p261 = scmp.eq.s32.totalorder %s29, 0
      %p262 = por %p260, %p261
      %p263 = scmp.ne.s32.totalorder %s249, %s250
      %p264 = scmp.eq.s32.totalorder %s30, 1
      %p265 = por %p263, %p264
      %p267 = scmp.ne.s32.totalorder %s250, %s266
      %p268 = scmp.eq.s32.totalorder %s30, 0
      %p269 = por %p267, %p268
      %p270 = scmp.le.s32.totalorder 1, %s24
      %p271 = scmp.lt.s32.totalorder %s24, 3
      %p272 = pnand %p270, %p271
      %p273 = pneg %p272
      // Predicated region
      $region9: #{tpu_custom_call.1} parent=5 // pred_check
        _
      $region10: #{tpu_custom_call.1} parent=5 // pred_check_branch
        %275 = sbr.rel (%p272) target = $region12
      $region11: #{tpu_custom_call.1} parent=5 // pred_region
        %s276 = ssub.s32 %s24, 1
        // Predicated region
        $region13: #{tpu_custom_call.1} parent=11 // pred_check
          %p277 = pneg %p127
        $region14: #{tpu_custom_call.1} parent=11 // pred_check_branch
          %279 = sbr.rel (%p277) target = $region16
        $region15: #{tpu_custom_call.1} parent=11 // pred_region
          %s280 = smul.u32 8, %s34
          %s282 = ssub.s32 512, 512
          %283 = vsyncadd [#allocation6], %s282
          %s284 = sadd.s32 %s35, %s280
          %s285 = smul.addr %s284, 64
          %s286 = scalar_lea.hbm %s2, %s285
          %s287 = sshll.u32 [#allocation7], 4
          %s288 = int_to_ptr.vmem [resolvable:$true] %s287
          %293 = dma.hbm_to_vmem [thread:$0]  %s286, 512, %s288, [#allocation6], 64, 64, 4
        $region16: #{tpu_custom_call.1} parent=11 // pred_fallthru
          _
        // Predicated region
        $region17: #{tpu_custom_call.1} parent=11 // pred_check
          %p294 = pneg %p148
        $region18: #{tpu_custom_call.1} parent=11 // pred_check_branch
          %296 = sbr.rel (%p294) target = $region20
        $region19: #{tpu_custom_call.1} parent=11 // pred_region
          %s298 = ssub.s32 256, 256
          %299 = vsyncadd [#allocation9], %s298
          %s300 = sshll.u32 [#allocation8], 4
          %s301 = int_to_ptr.vmem [resolvable:$true] %s300
          %306 = dma.hbm_to_vmem [thread:$0]  %s3, 256, %s301, [#allocation9], 128, 128, 8
        $region20: #{tpu_custom_call.1} parent=11 // pred_fallthru
          _
        // Predicated region
        $region21: #{tpu_custom_call.1} parent=11 // pred_check
          %p307 = pneg %p169
        $region22: #{tpu_custom_call.1} parent=11 // pred_check_branch
          %309 = sbr.rel (%p307) target = $region24
        $region23: #{tpu_custom_call.1} parent=11 // pred_region
          _
        $region24: #{tpu_custom_call.1} parent=11 // pred_fallthru
          _
        // Predicated region
        $region25: #{tpu_custom_call.1} parent=11 // pred_check
          %p310 = pneg %p190
        $region26: #{tpu_custom_call.1} parent=11 // pred_check_branch
          %312 = sbr.rel (%p310) target = $region28
        $region27: #{tpu_custom_call.1} parent=11 // pred_region
          _
        $region28: #{tpu_custom_call.1} parent=11 // pred_fallthru
          _
        // Predicated region
        $region29: #{tpu_custom_call.1} parent=11 // pred_check
          %p313 = pneg %p211
        $region30: #{tpu_custom_call.1} parent=11 // pred_check_branch
          %315 = sbr.rel (%p313) target = $region32
        $region31: #{tpu_custom_call.1} parent=11 // pred_region
          %s317 = ssub.s32 256, 256
          %318 = vsyncadd [#allocation9], %s317
          %s319 = sshll.u32 [#allocation10], 4
          %s320 = int_to_ptr.vmem [resolvable:$true] %s319
          %325 = dma.hbm_to_vmem [thread:$0]  %s6, 256, %s320, [#allocation9], 64, 64, 4
        $region32: #{tpu_custom_call.1} parent=11 // pred_fallthru
          _
        // Predicated region
        $region33: #{tpu_custom_call.1} parent=11 // pred_check
          %p326 = pneg %p232
        $region34: #{tpu_custom_call.1} parent=11 // pred_check_branch
          %328 = sbr.rel (%p326) target = $region36
        $region35: #{tpu_custom_call.1} parent=11 // pred_region
          _
        $region36: #{tpu_custom_call.1} parent=11 // pred_fallthru
          _
      $region12: #{tpu_custom_call.1} parent=5 // pred_fallthru
        _
      %p329 = scmp.lt.s32.totalorder %s24, 2
      // Predicated region
      $region37: #{tpu_custom_call.1} parent=5 // pred_check
        %p330 = pneg %p329
      $region38: #{tpu_custom_call.1} parent=5 // pred_check_branch
        %332 = sbr.rel (%p330) target = $region40
      $region39: #{tpu_custom_call.1} parent=5 // pred_region
        // Predicated region
        $region41: #{tpu_custom_call.1} parent=39 // pred_check
          %p333 = pneg %p65
        $region42: #{tpu_custom_call.1} parent=39 // pred_check_branch
          %335 = sbr.rel (%p333) target = $region44
        $region43: #{tpu_custom_call.1} parent=39 // pred_region
          %s336 = sand.u32 %s55, 1
          %s337 = scalar_lea.sflag [#allocation3], %s336
          %s338 = sand.u32 %s55, 1
          %s339 = smul.addr %s338, 8
          %s340 = scalar_lea.vmem [#allocation2], %s339
          %s342 = ssub.s32 128, 128
          %343 = vsyncadd %s337, %s342
          %s344 = sadd.s32 %s31, %s33
          %s345 = smul.addr %s344, 128
          %s346 = scalar_lea.hbm %s0, %s345
          %s348 = sshll.u32 %s340, 4
          %s349 = int_to_ptr.vmem [resolvable:$true] %s348
          %351 = dma.hbm_to_vmem [thread:$0]  %s346, 128, %s349, %s337
        $region44: #{tpu_custom_call.1} parent=39 // pred_fallthru
          _
        // Predicated region
        $region45: #{tpu_custom_call.1} parent=39 // pred_check
          %p352 = pneg %p93
        $region46: #{tpu_custom_call.1} parent=39 // pred_check_branch
          %354 = sbr.rel (%p352) target = $region48
        $region47: #{tpu_custom_call.1} parent=39 // pred_region
          %s355 = sand.u32 %s24, 1
          %s356 = scalar_lea.sflag [#allocation6], %s355
          %s357 = sand.u32 %s83, 1
          %s358 = smul.addr %s357, 8
          %s359 = scalar_lea.vmem [#allocation5], %s358
          %s361 = ssub.s32 128, 128
          %362 = vsyncadd %s356, %s361
          %s363 = sadd.s32 %s32, %s33
          %s364 = smul.addr %s363, 128
          %s365 = scalar_lea.hbm %s1, %s364
          %s367 = sshll.u32 %s359, 4
          %s368 = int_to_ptr.vmem [resolvable:$true] %s367
          %370 = dma.hbm_to_vmem [thread:$0]  %s365, 128, %s368, %s356
        $region48: #{tpu_custom_call.1} parent=39 // pred_fallthru
          _
      $region40: #{tpu_custom_call.1} parent=5 // pred_fallthru
        _
      %p371 = scmp.le.s32.totalorder 1, %s24
      %p372 = scmp.lt.s32.totalorder %s24, 3
      %p373 = pnand %p371, %p372
      %p374 = pneg %p373
      // Predicated region
      $region49: #{tpu_custom_call.1} parent=5 // pred_check
        _
      $region50: #{tpu_custom_call.1} parent=5 // pred_check_branch
        %376 = sbr.rel (%p373) target = $region52
      $region51: #{tpu_custom_call.1} parent=5 // pred_region
        %s377 = ssub.s32 %s24, 1
        %s378 = sand.u32 %s58, 1
        %s379 = scalar_lea.sflag [#allocation3], %s378
        %s380 = sand.u32 %s58, 1
        %s381 = smul.addr %s380, 8
        %s382 = scalar_lea.vmem [#allocation2], %s381
        // Predicated region
        $region53: #{tpu_custom_call.1} parent=51 // pred_check
          %p383 = pneg %p71
        $region54: #{tpu_custom_call.1} parent=51 // pred_check_branch
          %385 = sbr.rel (%p383) target = $region56
        $region55: #{tpu_custom_call.1} parent=51 // pred_region
          %386 = dma.done %s379, 128
        $region56: #{tpu_custom_call.1} parent=51 // pred_fallthru
          _
        %s387 = sand.u32 %s29, 1
        %s388 = scalar_lea.sflag [#allocation6], %s387
        %s389 = sand.u32 %s86, 1
        %s390 = smul.addr %s389, 8
        %s391 = scalar_lea.vmem [#allocation5], %s390
        // Predicated region
        $region57: #{tpu_custom_call.1} parent=51 // pred_check
          %p392 = pneg %p99
        $region58: #{tpu_custom_call.1} parent=51 // pred_check_branch
          %394 = sbr.rel (%p392) target = $region60
        $region59: #{tpu_custom_call.1} parent=51 // pred_region
          %395 = dma.done %s388, 128
        $region60: #{tpu_custom_call.1} parent=51 // pred_fallthru
          _
        // Predicated region
        $region61: #{tpu_custom_call.1} parent=51 // pred_check
          %p396 = pneg %p127
        $region62: #{tpu_custom_call.1} parent=51 // pred_check_branch
          %398 = sbr.rel (%p396) target = $region64
        $region63: #{tpu_custom_call.1} parent=51 // pred_region
          %399 = dma.done [#allocation6], 512
        $region64: #{tpu_custom_call.1} parent=51 // pred_fallthru
          _
        // Predicated region
        $region65: #{tpu_custom_call.1} parent=51 // pred_check
          %p400 = pneg %p148
        $region66: #{tpu_custom_call.1} parent=51 // pred_check_branch
          %402 = sbr.rel (%p400) target = $region68
        $region67: #{tpu_custom_call.1} parent=51 // pred_region
          %403 = dma.done [#allocation9], 256
        $region68: #{tpu_custom_call.1} parent=51 // pred_fallthru
          _
        // Predicated region
        $region69: #{tpu_custom_call.1} parent=51 // pred_check
          %p404 = pneg %p211
        $region70: #{tpu_custom_call.1} parent=51 // pred_check_branch
          %406 = sbr.rel (%p404) target = $region72
        $region71: #{tpu_custom_call.1} parent=51 // pred_region
          %407 = dma.done [#allocation9], 256
        $region72: #{tpu_custom_call.1} parent=51 // pred_fallthru
          _
        %s408 = sand.u32 %s58, 1
        %s409 = scalar_lea.sflag [#allocation3], %s408
        %s410 = sand.u32 %s58, 1
        %s411 = smul.addr %s410, 8
        %s412 = scalar_lea.vmem [#allocation2], %s411
        %p413 = pneg %p71
        %p414 = pneg %p68
        %s415 = sand.u32 %s29, 1
        %s416 = scalar_lea.sflag [#allocation6], %s415
        %s417 = sand.u32 %s86, 1
        %s418 = smul.addr %s417, 8
        %s419 = scalar_lea.vmem [#allocation5], %s418
        %p420 = pneg %p99
        %p421 = pneg %p96
        %p422 = pneg %p127
        %p423 = pneg %p124
        %p424 = pneg %p148
        %p425 = pneg %p145
        %p426 = pneg %p169
        %p427 = pneg %p166
        %p428 = pneg %p190
        %p429 = pneg %p187
        %p430 = pneg %p211
        %p431 = pneg %p208
        %p432 = pneg %p232
        %p433 = pneg %p229
        %p434 = pneg %p262
        %p435 = pneg %p259
        %s436 = sand.u32 %s249, 1
        %s437 = scalar_lea.sflag [#allocation4], %s436
        %s438 = sand.u32 %s249, 1
        %s439 = smul.addr %s438, 32
        %s440 = scalar_lea.vmem [#allocation11], %s439
        %s441 = smul.u32 8, %s34
        %s442 = smul.u32 8, %s34
        %v444 = vld [vmem:[%s382] sm:$0xff]
        %v445 = vld [vmem:[%s391] sm:$0xff]
        %v446 = vld [vmem:[#allocation8] sm:$0xff]
        %v447 = vld [vmem:[#allocation8 + $0x8] sm:$0xff]
        %v448 = vld [vmem:[%s4] sm:$0x1]
        %v450 = vlaneseq
        %v451 = vshrl.u32 %v450, 7
        %v452 = vsub.s32 0, %v451
        %v453 = vrot.slane %v448, %v452
        %vm455 = vcmask 130048
        %v457 = vsel %vm455, %v444, 0
        %459 = vmatprep.subr.mxu0 0.0
        %460 = vmatpush1.msra.mxu0 %v446
        %461 = vmatprep.subr.mxu0 0.0
        %462 = vmatpush1.msra.mxu0 %v447
        %463 = vmatprep.subr.mxu0 0.0
        %464 = vmatpush1.msra.mxu0 0.0
        %465 = vmatprep.subr.mxu0 0.0
        %466 = vmatpush1.msra.mxu0 0.0
        %467 = vmatprep.subr.mxu0 0.0
        %468 = vmatpush1.msra.mxu0 0.0
        %469 = vmatprep.subr.mxu0 0.0
        %470 = vmatpush1.msra.mxu0 0.0
        %471 = vmatprep.subr.mxu0 0.0
        %472 = vmatpush1.msra.mxu0 0.0
        %473 = vmatprep.subr.mxu0 0.0
        %474 = vmatpush1.msra.mxu0 0.0
        %475 = vmatprep.subr.mxu0 0.0
        %476 = vmatpush1.msra.mxu0 0.0
        %477 = vmatprep.subr.mxu0 0.0
        %478 = vmatpush1.msra.mxu0 0.0
        %479 = vmatprep.subr.mxu0 0.0
        %480 = vmatpush1.msra.mxu0 0.0
        %481 = vmatprep.subr.mxu0 0.0
        %482 = vmatpush1.msra.mxu0 0.0
        %483 = vmatprep.subr.mxu0 0.0
        %484 = vmatpush1.msra.mxu0 0.0
        %485 = vmatprep.subr.mxu0 0.0
        %486 = vmatpush1.msra.mxu0 0.0
        %487 = vmatprep.subr.mxu0 0.0
        %488 = vmatpush1.msra.mxu0 0.0
        %489 = vmatprep.subr.mxu0 0.0
        %490 = vmatpush1.msra.mxu0 0.0
        %491 = vmatprep.subr.mxu0 0.0
        %492 = vmatpush1.msra.mxu0 0.0
        %493 = vmatprep.subr.mxu0 0.0
        %494 = vmatpush1.msra.mxu0 0.0
        %495 = vmatprep.subr.mxu0 0.0
        %496 = vmatpush1.msra.mxu0 0.0
        %497 = vmatprep.subr.mxu0 0.0
        %498 = vmatpush1.msra.mxu0 0.0
        %499 = vmatprep.subr.mxu0 0.0
        %500 = vmatpush1.msra.mxu0 0.0
        %501 = vmatprep.subr.mxu0 0.0
        %502 = vmatpush1.msra.mxu0 0.0
        %503 = vmatprep.subr.mxu0 0.0
        %504 = vmatpush1.msra.mxu0 0.0
        %505 = vmatprep.subr.mxu0 0.0
        %506 = vmatpush1.msra.mxu0 0.0
        %507 = vmatprep.subr.mxu0 0.0
        %508 = vmatpush1.msra.mxu0 0.0
        %509 = vmatprep.subr.mxu0 0.0
        %510 = vmatpush1.msra.mxu0 0.0
        %511 = vmatprep.subr.mxu0 0.0
        %512 = vmatpush1.msra.mxu0 0.0
        %513 = vmatprep.subr.mxu0 0.0
        %514 = vmatpush1.msra.mxu0 0.0
        %515 = vmatprep.subr.mxu0 0.0
        %516 = vmatpush1.msra.mxu0 0.0
        %517 = vmatprep.subr.mxu0 0.0
        %518 = vmatpush1.msra.mxu0 0.0
        %519 = vmatprep.subr.mxu0 0.0
        %520 = vmatpush1.msra.mxu0 0.0
        %521 = vmatprep.subr.mxu0 0.0
        %522 = vmatpush1.msra.mxu0 0.0
        %523 = vmatprep.mubr.f32.mxu0 0.0
        %524 = vmatmul.mubr.f32.gmra.mrb[0].mxu0 %v457
        %v525 = vpop.f32.mrb[0].mxu0
        %v526 = vadd.f32 %v453, %v525
        %v527 = vpop.f32.mrb[0].mxu0
        %528 = vdwg.mxu0
        %v529 = vld [vmem:[%s5] sm:$0xff]
        %v530 = vld [vmem:[%s5 + $0x8] sm:$0xff]
        %v532 = vsel %vm455, %v445, 0
        %534 = vmatprep.subr.mxu0 0.0
        %535 = vmatpush1.msra.mxu0 %v529
        %536 = vmatprep.subr.mxu0 0.0
        %537 = vmatpush1.msra.mxu0 %v530
        %538 = vmatprep.subr.mxu0 0.0
        %539 = vmatpush1.msra.mxu0 0.0
        %540 = vmatprep.subr.mxu0 0.0
        %541 = vmatpush1.msra.mxu0 0.0
        %542 = vmatprep.subr.mxu0 0.0
        %543 = vmatpush1.msra.mxu0 0.0
        %544 = vmatprep.subr.mxu0 0.0
        %545 = vmatpush1.msra.mxu0 0.0
        %546 = vmatprep.subr.mxu0 0.0
        %547 = vmatpush1.msra.mxu0 0.0
        %548 = vmatprep.subr.mxu0 0.0
        %549 = vmatpush1.msra.mxu0 0.0
        %550 = vmatprep.subr.mxu0 0.0
        %551 = vmatpush1.msra.mxu0 0.0
        %552 = vmatprep.subr.mxu0 0.0
        %553 = vmatpush1.msra.mxu0 0.0
        %554 = vmatprep.subr.mxu0 0.0
        %555 = vmatpush1.msra.mxu0 0.0
        %556 = vmatprep.subr.mxu0 0.0
        %557 = vmatpush1.msra.mxu0 0.0
        %558 = vmatprep.subr.mxu0 0.0
        %559 = vmatpush1.msra.mxu0 0.0
        %560 = vmatprep.subr.mxu0 0.0
        %561 = vmatpush1.msra.mxu0 0.0
        %562 = vmatprep.subr.mxu0 0.0
        %563 = vmatpush1.msra.mxu0 0.0
        %564 = vmatprep.subr.mxu0 0.0
        %565 = vmatpush1.msra.mxu0 0.0
        %566 = vmatprep.subr.mxu0 0.0
        %567 = vmatpush1.msra.mxu0 0.0
        %568 = vmatprep.subr.mxu0 0.0
        %569 = vmatpush1.msra.mxu0 0.0
        %570 = vmatprep.subr.mxu0 0.0
        %571 = vmatpush1.msra.mxu0 0.0
        %572 = vmatprep.subr.mxu0 0.0
        %573 = vmatpush1.msra.mxu0 0.0
        %574 = vmatprep.subr.mxu0 0.0
        %575 = vmatpush1.msra.mxu0 0.0
        %576 = vmatprep.subr.mxu0 0.0
        %577 = vmatpush1.msra.mxu0 0.0
        %578 = vmatprep.subr.mxu0 0.0
        %579 = vmatpush1.msra.mxu0 0.0
        %580 = vmatprep.subr.mxu0 0.0
        %581 = vmatpush1.msra.mxu0 0.0
        %582 = vmatprep.subr.mxu0 0.0
        %583 = vmatpush1.msra.mxu0 0.0
        %584 = vmatprep.subr.mxu0 0.0
        %585 = vmatpush1.msra.mxu0 0.0
        %586 = vmatprep.subr.mxu0 0.0
        %587 = vmatpush1.msra.mxu0 0.0
        %588 = vmatprep.subr.mxu0 0.0
        %589 = vmatpush1.msra.mxu0 0.0
        %590 = vmatprep.subr.mxu0 0.0
        %591 = vmatpush1.msra.mxu0 0.0
        %592 = vmatprep.subr.mxu0 0.0
        %593 = vmatpush1.msra.mxu0 0.0
        %594 = vmatprep.subr.mxu0 0.0
        %595 = vmatpush1.msra.mxu0 0.0
        %596 = vmatprep.subr.mxu0 0.0
        %597 = vmatpush1.msra.mxu0 0.0
        %598 = vmatprep.mubr.f32.mxu0 0.0
        %599 = vmatmul.mubr.f32.gmra.mrb[0].mxu0 %v532
        %v600 = vpop.f32.mrb[0].mxu0
        %v601 = vadd.f32 0.0, %v600
        %v602 = vpop.f32.mrb[0].mxu0
        %603 = vdwg.mxu0
        %v605 = vcombine.high %v526, %v526
        %v607 = vunpack.c.l.s4 1966171168
        %v608 = vunpack.c.0.s8 %v607
        %v609 = vlaneseq
        %v610 = vshrl.u32 %v609, 7
        %v611 = vsub.s32 %v608, %v610
        %v612 = vrot.slane %v526, %v611
        %v614 = vunpack.c.l.s4 1966171168
        %v615 = vunpack.c.0.s8 %v614
        %v616 = vlaneseq
        %v617 = vshrl.u32 %v616, 7
        %v618 = vsub.s32 %v615, %v617
        %v619 = vrot.slane %v605, %v618
        %v620 = vcombine.high %v612, %v612
        %v621 = vcombine.high %v619, %v619
        %v623 = vunpack.c.l.s4 1966171168
        %v624 = vunpack.c.0.s8 %v623
        %v625 = vlaneseq
        %v626 = vshrl.u32 %v625, 7
        %v627 = vsub.s32 %v624, %v626
        %v628 = vrot.slane %v612, %v627
        %v630 = vunpack.c.l.s4 1966171168
        %v631 = vunpack.c.0.s8 %v630
        %v632 = vlaneseq
        %v633 = vshrl.u32 %v632, 7
        %v634 = vsub.s32 %v631, %v633
        %v635 = vrot.slane %v619, %v634
        %v637 = vunpack.c.l.s4 1966171168
        %v638 = vunpack.c.0.s8 %v637
        %v639 = vlaneseq
        %v640 = vshrl.u32 %v639, 7
        %v641 = vsub.s32 %v638, %v640
        %v642 = vrot.slane %v620, %v641
        %v644 = vunpack.c.l.s4 1966171168
        %v645 = vunpack.c.0.s8 %v644
        %v646 = vlaneseq
        %v647 = vshrl.u32 %v646, 7
        %v648 = vsub.s32 %v645, %v647
        %v649 = vrot.slane %v621, %v648
        %v650 = vcombine.high %v628, %v628
        %v651 = vcombine.high %v635, %v635
        %v652 = vcombine.high %v642, %v642
        %v653 = vcombine.high %v649, %v649
        %v654 = vlaneseq
        %v655 = vshrl.u32 %v654, 7
        %v656 = vsub.s32 0, %v655
        %v657 = vrot.slane %v628, %v656
        %v658 = vlaneseq
        %v659 = vshrl.u32 %v658, 7
        %v660 = vsub.s32 0, %v659
        %v661 = vrot.slane %v642, %v660
        %v662 = vlaneseq
        %v663 = vshrl.u32 %v662, 7
        %v664 = vsub.s32 0, %v663
        %v665 = vrot.slane %v650, %v664
        %v666 = vlaneseq
        %v667 = vshrl.u32 %v666, 7
        %v668 = vsub.s32 0, %v667
        %v669 = vrot.slane %v652, %v668
        %v670 = vlaneseq
        %v671 = vshrl.u32 %v670, 7
        %v672 = vsub.s32 0, %v671
        %v673 = vrot.slane %v635, %v672
        %v674 = vlaneseq
        %v675 = vshrl.u32 %v674, 7
        %v676 = vsub.s32 0, %v675
        %v677 = vrot.slane %v649, %v676
        %v678 = vlaneseq
        %v679 = vshrl.u32 %v678, 7
        %v680 = vsub.s32 0, %v679
        %v681 = vrot.slane %v651, %v680
        %v682 = vlaneseq
        %v683 = vshrl.u32 %v682, 7
        %v684 = vsub.s32 0, %v683
        %v685 = vrot.slane %v653, %v684
        %v694 = vadd.f32 %v657, %v601
        %v695 = vadd.f32 %v661, %v601
        %v696 = vadd.f32 %v665, %v601
        %v697 = vadd.f32 %v669, %v601
        %v698 = vadd.f32 %v673, %v601
        %v699 = vadd.f32 %v677, %v601
        %v700 = vadd.f32 %v681, %v601
        %v701 = vadd.f32 %v685, %v601
        %v702 = vmax.f32 %v694, 0.0
        %v703 = vmax.f32 %v695, 0.0
        %v704 = vmax.f32 %v696, 0.0
        %v705 = vmax.f32 %v697, 0.0
        %v706 = vmax.f32 %v698, 0.0
        %v707 = vmax.f32 %v699, 0.0
        %v708 = vmax.f32 %v700, 0.0
        %v709 = vmax.f32 %v701, 0.0
        %v710 = vld [vmem:[#allocation7] sm:$0xf]
        %v711 = vld [vmem:[#allocation7 + $0x4] sm:$0xf]
        %v712 = vld [vmem:[#allocation7 + $0x8] sm:$0xf]
        %v713 = vld [vmem:[#allocation7 + $0xc] sm:$0xf]
        %v714 = vld [vmem:[#allocation7 + $0x10] sm:$0xf]
        %v715 = vld [vmem:[#allocation7 + $0x14] sm:$0xf]
        %v716 = vld [vmem:[#allocation7 + $0x18] sm:$0xf]
        %v717 = vld [vmem:[#allocation7 + $0x1c] sm:$0xf]
        %v718 = vunpack.c.l.bf16 %v710
        %v719 = vunpack.c.l.bf16 %v711
        %v720 = vunpack.c.l.bf16 %v712
        %v721 = vunpack.c.l.bf16 %v713
        %v722 = vunpack.c.l.bf16 %v714
        %v723 = vunpack.c.l.bf16 %v715
        %v724 = vunpack.c.l.bf16 %v716
        %v725 = vunpack.c.l.bf16 %v717
        %v726 = vadd.f32 %v702, %v718
        %v727 = vadd.f32 %v703, %v719
        %v728 = vadd.f32 %v704, %v720
        %v729 = vadd.f32 %v705, %v721
        %v730 = vadd.f32 %v706, %v722
        %v731 = vadd.f32 %v707, %v723
        %v732 = vadd.f32 %v708, %v724
        %v733 = vadd.f32 %v709, %v725
        %v734 = vpack.c.bf16 %v727, %v726
        %v735 = vpack.c.bf16 %v729, %v728
        %v736 = vpack.c.bf16 %v731, %v730
        %v737 = vpack.c.bf16 %v733, %v732
        %v738 = vld [vmem:[#allocation10] sm:$0xf]
        %v739 = vld [vmem:[#allocation10 + $0x4] sm:$0xf]
        %v740 = vld [vmem:[#allocation10 + $0x8] sm:$0xf]
        %v741 = vld [vmem:[#allocation10 + $0xc] sm:$0xf]
        %v742 = vld [vmem:[%s7] sm:$0x1]
        %v744 = vlaneseq
        %v745 = vshrl.u32 %v744, 7
        %v746 = vsub.s32 0, %v745
        %v747 = vrot.slane %v742, %v746
        %v753 = vunpack.c.l.b16 %v738
        %v754 = vunpack.c.l.b16 %v739
        %v755 = vunpack.c.l.b16 %v740
        %v756 = vunpack.c.l.b16 %v741
        %v757 = vpack.c.b16 %v754, %v753
        %v758 = vpack.c.b16 %v756, %v755
        %vm761 = vcmask 261120
        %v763 = vsel %vm761, %v734, 0
        %v766 = vsel %vm761, %v735, 0
        %v769 = vsel %vm761, %v736, 0
        %v772 = vsel %vm761, %v737, 0
        %774 = vmatprep.subr.bf16.mxu0 0
        %775 = vmatpush1.bf16.msra.mxu0 %v757
        %776 = vmatprep.subr.bf16.mxu0 0
        %777 = vmatpush1.bf16.msra.mxu0 %v758
        %778 = vmatprep.subr.bf16.mxu0 0
        %779 = vmatpush1.bf16.msra.mxu0 0
        %780 = vmatprep.subr.bf16.mxu0 0
        %781 = vmatpush1.bf16.msra.mxu0 0
        %782 = vmatprep.subr.bf16.mxu0 0
        %783 = vmatpush1.bf16.msra.mxu0 0
        %784 = vmatprep.subr.bf16.mxu0 0
        %785 = vmatpush1.bf16.msra.mxu0 0
        %786 = vmatprep.subr.bf16.mxu0 0
        %787 = vmatpush1.bf16.msra.mxu0 0
        %788 = vmatprep.subr.bf16.mxu0 0
        %789 = vmatpush1.bf16.msra.mxu0 0
        %790 = vmatprep.subr.bf16.mxu0 0
        %791 = vmatpush1.bf16.msra.mxu0 0
        %792 = vmatprep.subr.bf16.mxu0 0
        %793 = vmatpush1.bf16.msra.mxu0 0
        %794 = vmatprep.subr.bf16.mxu0 0
        %795 = vmatpush1.bf16.msra.mxu0 0
        %796 = vmatprep.subr.bf16.mxu0 0
        %797 = vmatpush1.bf16.msra.mxu0 0
        %798 = vmatprep.subr.bf16.mxu0 0
        %799 = vmatpush1.bf16.msra.mxu0 0
        %800 = vmatprep.subr.bf16.mxu0 0
        %801 = vmatpush1.bf16.msra.mxu0 0
        %802 = vmatprep.subr.bf16.mxu0 0
        %803 = vmatpush1.bf16.msra.mxu0 0
        %804 = vmatprep.subr.bf16.mxu0 0
        %805 = vmatpush1.bf16.msra.mxu0 0
        %806 = vmatprep.mubr.bf16.mxu0 0
        %807 = vmatmul.mubr.bf16.gmra.mrb[0].mxu0 %v763
        %v808 = vpop.f32.mrb[0].mxu0
        %v809 = vadd.f32 %v747, %v808
        %v810 = vpop.f32.mrb[0].mxu0
        %v811 = vpop.f32.mrb[0].mxu0
        %v812 = vadd.f32 %v747, %v811
        %v813 = vpop.f32.mrb[0].mxu0
        %814 = vmatprep.mubr.bf16.mxu0 0
        %815 = vmatmul.mubr.bf16.gmra.mrb[0].mxu0 %v766
        %v816 = vpop.f32.mrb[0].mxu0
        %v817 = vadd.f32 %v747, %v816
        %v818 = vpop.f32.mrb[0].mxu0
        %v819 = vpop.f32.mrb[0].mxu0
        %v820 = vadd.f32 %v747, %v819
        %v821 = vpop.f32.mrb[0].mxu0
        %822 = vmatprep.mubr.bf16.mxu0 0
        %823 = vmatmul.mubr.bf16.gmra.mrb[0].mxu0 %v769
        %v824 = vpop.f32.mrb[0].mxu0
        %v825 = vadd.f32 %v747, %v824
        %v826 = vpop.f32.mrb[0].mxu0
        %v827 = vpop.f32.mrb[0].mxu0
        %v828 = vadd.f32 %v747, %v827
        %v829 = vpop.f32.mrb[0].mxu0
        %830 = vmatprep.mubr.bf16.mxu0 0
        %831 = vmatmul.mubr.bf16.gmra.mrb[0].mxu0 %v772
        %v832 = vpop.f32.mrb[0].mxu0
        %v833 = vadd.f32 %v747, %v832
        %v834 = vpop.f32.mrb[0].mxu0
        %v835 = vpop.f32.mrb[0].mxu0
        %v836 = vadd.f32 %v747, %v835
        %v837 = vpop.f32.mrb[0].mxu0
        %838 = vdwg.mxu0
        %v839 = vmax.f32 %v809, 0.0
        %v840 = vmax.f32 %v812, 0.0
        %v841 = vmax.f32 %v817, 0.0
        %v842 = vmax.f32 %v820, 0.0
        %v843 = vmax.f32 %v825, 0.0
        %v844 = vmax.f32 %v828, 0.0
        %v845 = vmax.f32 %v833, 0.0
        %v846 = vmax.f32 %v836, 0.0
        %v847 = vpack.c.bf16 %v839, %v839
        %v848 = vpack.c.bf16 %v840, %v840
        %v849 = vpack.c.bf16 %v841, %v841
        %v850 = vpack.c.bf16 %v842, %v842
        %v851 = vpack.c.bf16 %v843, %v843
        %v852 = vpack.c.bf16 %v844, %v844
        %v853 = vpack.c.bf16 %v845, %v845
        %v854 = vpack.c.bf16 %v846, %v846
        %vm855 = vcmask 257024
        %856 = vst.msk [vmem:[%s440] sm:$0xf] %vm855, %v847
        %857 = vst.msk [vmem:[%s440 + $0x4] sm:$0xf] %vm855, %v848
        %858 = vst.msk [vmem:[%s440 + $0x8] sm:$0xf] %vm855, %v849
        %859 = vst.msk [vmem:[%s440 + $0xc] sm:$0xf] %vm855, %v850
        %860 = vst.msk [vmem:[%s440 + $0x10] sm:$0xf] %vm855, %v851
        %861 = vst.msk [vmem:[%s440 + $0x14] sm:$0xf] %vm855, %v852
        %862 = vst.msk [vmem:[%s440 + $0x18] sm:$0xf] %vm855, %v853
        %863 = vst.msk [vmem:[%s440 + $0x1c] sm:$0xf] %vm855, %v854
        %s864 = sand.u32 %s249, 1
        %s865 = scalar_lea.sflag [#allocation4], %s864
        %s866 = sand.u32 %s249, 1
        %s867 = smul.addr %s866, 32
        %s868 = scalar_lea.vmem [#allocation11], %s867
        // Predicated region
        $region73: #{tpu_custom_call.1} parent=51 // pred_check
          %p869 = pneg %p259
        $region74: #{tpu_custom_call.1} parent=51 // pred_check_branch
          %871 = sbr.rel (%p869) target = $region76
        $region75: #{tpu_custom_call.1} parent=51 // pred_region
          %s872 = smul.u32 8, %s34
          %s874 = ssub.s32 512, 512
          %875 = vsyncadd %s865, %s874
          %s876 = sadd.s32 %s35, %s872
          %s877 = smul.addr %s36, 8
          %s878 = sadd.s32 %s876, %s877
          %s879 = smul.addr %s878, 64
          %s880 = scalar_lea.hbm %s8, %s879
          %s881 = sshll.u32 %s868, 4
          %s882 = int_to_ptr.vmem [resolvable:$true] %s881
          %887 = dma.vmem_to_hbm [thread:$0]  %s882, 512, %s880, %s865, 64, 64, 4
        $region76: #{tpu_custom_call.1} parent=51 // pred_fallthru
          _
      $region52: #{tpu_custom_call.1} parent=5 // pred_fallthru
        _
      %p888 = scmp.le.s32.totalorder 2, %s24
      // Predicated region
      $region77: #{tpu_custom_call.1} parent=5 // pred_check
        %p889 = pneg %p888
      $region78: #{tpu_custom_call.1} parent=5 // pred_check_branch
        %891 = sbr.rel (%p889) target = $region80
      $region79: #{tpu_custom_call.1} parent=5 // pred_region
        %s892 = ssub.s32 %s24, 2
        // Predicated region
        $region81: #{tpu_custom_call.1} parent=79 // pred_check
          %p893 = pneg %p265
        $region82: #{tpu_custom_call.1} parent=79 // pred_check_branch
          %895 = sbr.rel (%p893) target = $region84
        $region83: #{tpu_custom_call.1} parent=79 // pred_region
          %s896 = sand.u32 %s250, 1
          %s897 = scalar_lea.sflag [#allocation4], %s896
          %s898 = sand.u32 %s250, 1
          %s899 = smul.addr %s898, 32
          %s900 = scalar_lea.vmem [#allocation11], %s899
          %901 = dma.done %s897, 512
        $region84: #{tpu_custom_call.1} parent=79 // pred_fallthru
          _
      $region80: #{tpu_custom_call.1} parent=5 // pred_fallthru
        _
    $region6: #{tpu_custom_call.1} parent=1 // loop_footer
      %s28 = sadd.s32 1, %s24
    $region7: #{tpu_custom_call.1} parent=1 // loop_footer_branch
      %23 = sbr.rel target = $region3
    $region8: #{tpu_custom_call.1} parent=1 // loop_exit
      _
    %902 = vsyncpa [#allocation3], 1
    %s903 = scalar_lea.sflag [#allocation3], 1
    %904 = vsyncpa %s903, 1
    %905 = vsyncpa [#allocation6], 1
    %s906 = scalar_lea.sflag [#allocation6], 1
    %907 = vsyncpa %s906, 1
    %908 = vsyncpa [#allocation9], 1
    %909 = vsyncpa [#allocation4], 1
    %s910 = scalar_lea.sflag [#allocation4], 1
    %911 = vsyncpa %s910, 1

</llo_original>
